<compile_context>
chip_gen: v7x
topology: tpu7x:2x2x1
jax: 0.10.0
libtpu: 0.0.40
codegen_flags: <defaults>
</compile_context>

<pallas_src>
import jax
import jax.numpy as jnp
from jax.experimental import pallas as pl
from jax.experimental.pallas import tpu as pltpu


# ----------------------------------------------------------------------------
# Kernel:  v1 = W1t@x + b1  ->  g = v1*(1+tanh(c*(v1+a*v1^3)))  ->  out = W2t@g + b2
# Operands are channels-on-sublanes, flattened-spatial-on-lanes (C, TM) tiles.
# The GELU's 0.5 is pre-folded into W2t by the wrapper.
# ----------------------------------------------------------------------------
def _make_fused_kernel(use_mxu):
    def kernel(x_ref, w1t_ref, b1_ref, w2t_ref, b2_ref, o_ref):
        x = x_ref[0, :, :]                    # (Cin, TM)  f32
        w1t = w1t_ref[...]                    # (C1, Cin)
        w2t = w2t_ref[...]                    # (C2, C1)   (already scaled by 0.5)
        b1 = b1_ref[...]                      # (C1, 1)
        b2 = b2_ref[...]                      # (C2, 1)
        cin, m = x.shape
        c1 = w1t.shape[0]
        c2 = w2t.shape[0]

        if use_mxu:
            # MXU channel contraction (vector-extended slot), f32 accumulation.
            v1 = jnp.dot(w1t, x, preferred_element_type=jnp.float32) + b1
        else:
            # Tiny / sub-128-lane blocks: unrolled VPU outer-product FMAs.
            v1 = jnp.broadcast_to(b1, (c1, m))
            for k in range(cin):
                v1 = v1 + w1t[:, k:k + 1] * x[k:k + 1, :]

        # tanh-GELU with the 0.5 folded into w2t.
        inner = v1 + 0.044715 * (v1 * v1 * v1)
        g = v1 * (jnp.tanh(0.7978845608028654 * inner) + 1.0)

        if use_mxu:
            out = jnp.dot(w2t, g, preferred_element_type=jnp.float32) + b2
        else:
            out = jnp.broadcast_to(b2, (c2, m))
            for k in range(c1):
                out = out + w2t[:, k:k + 1] * g[k:k + 1, :]

        o_ref[0, :, :] = out.astype(o_ref.dtype)

    return kernel


def fused_pointwise_convs(x, w1t, b1c, w2t, b2c, *, tm_cap=32768):
    """x: (N, Cin, M) f32  ->  (N, C2, M) f32   (conv1x1 -> GELU -> conv1x1, fused)."""
    N, cin, M = x.shape
    c1 = w1t.shape[0]
    c2 = w2t.shape[0]

    if M < 128:
        TM = M                      # full-extent (lane-sparse) block; only tiny inputs
        prefer_mxu = False
    else:
        TM = min(tm_cap, pl.cdiv(M, 128) * 128)
        if N == 1:
            # keep >= 2 M-tiles so both v7x TensorCores get work
            TM = min(TM, pl.cdiv(pl.cdiv(M, 2), 128) * 128)
        prefer_mxu = True
    grid_m = pl.cdiv(M, TM)         # partial last tile handled by Pallas (no pre-pad)

    def call(use_mxu):
        grid_spec = pl.GridSpec(
            grid=(N, grid_m),
            in_specs=[
                pl.BlockSpec((1, cin, TM), lambda n, i: (n, 0, i)),  # activations: tiled on M
                pl.BlockSpec((c1, cin), lambda n, i: (0, 0)),        # weights / biases:
                pl.BlockSpec((c1, 1), lambda n, i: (0, 0)),          # whole-array blocks,
                pl.BlockSpec((c2, c1), lambda n, i: (0, 0)),         # reused by every tile
                pl.BlockSpec((c2, 1), lambda n, i: (0, 0)),
            ],
            out_specs=pl.BlockSpec((1, c2, TM), lambda n, i: (n, 0, i)),
        )
        return pl.pallas_call(
            _make_fused_kernel(use_mxu),
            out_shape=jax.ShapeDtypeStruct((N, c2, M), jnp.float32),
            grid_spec=grid_spec,
            compiler_params=pltpu.CompilerParams(
                dimension_semantics=("parallel", "parallel"),
                vmem_limit_bytes=48 * 1024 * 1024,
            ),
        )(x, w1t, b1c, w2t, b2c)

    if prefer_mxu:
        try:
            out = call(True)
            jax.block_until_ready(out)
            return out
        except Exception:
            # TODO(synk): tiny-K (3/5) f32 MXU matmul failed to lower/run on this
            # toolchain; fall back to the VPU outer-product formulation.
            pass
    return call(False)


# ----------------------------------------------------------------------------
# Wrapper: index plumbing for the two 1x1 transposed convolutions.
# ----------------------------------------------------------------------------
def _tanh_gelu(v):
    return (0.5 * v) * (jnp.tanh(0.7978845608028654 * (v + 0.044715 * v * v * v)) + 1.0)


def model_forward(x_nchw, w1, b1, w2, b2):
    """x: (N, 3, H, W) NCHW  ->  (N, 8, H-2, 2W-5), matching the module's forward."""
    N, cin, H, W = x_nchw.shape
    c1 = w1.shape[1]
    c2 = w2.shape[1]
    Hc, Wr = H - 2, W - 2           # output rows; x-dependent output columns
    Wc = 2 * W - 5                  # total output columns (= 2*Wr - 1)

    # Only input rows 1..H-2 / cols 1..W-2 survive the t1/t2 padding crops; keep the
    # native NCHW layout so kernel blocks are lane-dense with no wrapper transpose.
    x_real = x_nchw[:, :, 1:H - 1, 1:W - 1].reshape(N, cin, Hc * Wr)

    w1t = w1.T                                    # (C1, Cin)
    w2t_scaled = (0.5 * w2).T                     # (C2, C1): GELU 0.5 folded in
    b1c = b1.reshape(c1, 1)
    b2c = b2.reshape(c2, 1)

    out_real = fused_pointwise_convs(x_real, w1t, b1c, w2t_scaled, b2c)
    out_real = out_real.reshape(N, c2, Hc, Wr)

    # Stride-2 dilation columns never see x: v1 == b1 there, so the output is one
    # constant 8-vector (computed once; elementwise sum avoids matmul precision drift).
    out_const = jnp.sum(_tanh_gelu(b1)[:, None] * w2, axis=0) + b2          # (C2,)
    const_cols = jnp.broadcast_to(out_const.reshape(1, c2, 1, 1), (N, c2, Hc, Wr))

    # Single-pass interleave: [r0, c, r1, c, ...] -> width 2*Wr -> crop to Wc.
    out = jnp.stack([out_real, const_cols], axis=-1).reshape(N, c2, Hc, 2 * Wr)
    return out[..., :Wc]                          # NCHW (N, 8, H-2, 2W-5)


# ----------------------------------------------------------------------------
# Plain-JAX reference (explicit conv-transpose construction) for sanity checks.
# ----------------------------------------------------------------------------
def reference_forward(x_nchw, w1, b1, w2, b2):
    N, cin, H, W = x_nchw.shape
    c1 = w1.shape[1]
    Wf = (W - 1) * 2 + 1
    hp = jax.lax.Precision.HIGHEST
    y = jnp.einsum('nchw,cd->nhwd', x_nchw, w1, precision=hp)
    full = jnp.zeros((N, H, Wf, c1), x_nchw.dtype).at[:, :, ::2, :].set(y)
    v1 = (full + b1.reshape(1, 1, 1, -1))[:, :, 1:Wf - 1, :]     # t1 W-padding crop
    v2 = v1 * 0.5
    v5 = v1 + 0.044715 * v1 * v1 * v1
    v9 = v2 * (jnp.tanh(0.7978845608028654 * v5) + 1.0)
    v9c = v9[:, 1:-1, 1:-1, :]                                   # t2 padding crop
    out = jnp.einsum('nhwc,cd->nhwd', v9c, w2, precision=hp) + b2.reshape(1, 1, 1, -1)
    return jnp.transpose(out, (0, 3, 1, 2))


if __name__ == "__main__":
    key = jax.random.PRNGKey(0)
    k1, k2, k3, k4, k5, k6 = jax.random.split(key, 6)

    # ConvTranspose2d 1x1 weights parameterized as (Cin, Cout).
    w1 = 0.3 * jax.random.normal(k1, (3, 5), jnp.float32)
    b1 = 0.1 * jax.random.normal(k2, (5,), jnp.float32)
    w2 = 0.3 * jax.random.normal(k3, (5, 8), jnp.float32)
    b2 = 0.1 * jax.random.normal(k4, (8,), jnp.float32)

    # Test 1: exactly the module's input shape  x1 = randn(1, 3, 5, 5)  (VPU path).
    x1 = jax.random.normal(k5, (1, 3, 5, 5), jnp.float32)
    out1 = jax.block_until_ready(model_forward(x1, w1, b1, w2, b2))
    ref1 = reference_forward(x1, w1, b1, w2, b2)
    assert out1.shape == (1, 8, 3, 5), out1.shape
    assert jnp.allclose(out1, ref1, atol=1e-5, rtol=1e-5), "tiny-path mismatch"

    # Test 2: larger spatial extent -> tiled, lane-dense MXU path with a partial
    # last M-tile.  Tolerance leaves headroom for MXU multi-pass f32 rounding vs the
    # FMA-ordered reference; structural bugs are O(0.1-1) and still caught.
    x2 = jax.random.normal(k6, (2, 3, 34, 131), jnp.float32)
    out2 = jax.block_until_ready(model_forward(x2, w1, b1, w2, b2))
    ref2 = reference_forward(x2, w1, b1, w2, b2)
    assert out2.shape == (2, 8, 32, 257), out2.shape
    assert jnp.allclose(out2, ref2, atol=3e-3, rtol=3e-3), "tiled-path mismatch"

    print("KERNEL_OK")
</pallas_src>

<mosaic_0001>
module attributes {stable_mosaic.version = 11 : i64} {
  func.func @kernel(%arg0: i32, %arg1: i32, %arg2: memref<1x3x9xf32, #tpu.memory_space<vmem>>, %arg3: memref<5x3xf32, #tpu.memory_space<vmem>>, %arg4: memref<5x1xf32, #tpu.memory_space<vmem>>, %arg5: memref<8x5xf32, #tpu.memory_space<vmem>>, %arg6: memref<8x1xf32, #tpu.memory_space<vmem>>, %arg7: memref<1x8x9xf32, #tpu.memory_space<vmem>>) attributes {dimension_semantics = [#tpu.dimension_semantics<parallel>, #tpu.dimension_semantics<parallel>], iteration_bounds = array<i64: 1, 1>, scalar_prefetch = 0 : i64, scratch_operands = 0 : i64, tpu.core_type = #tpu.core_type<tc>, window_params = [{transform_indices = @transform_0, window_bounds = array<i64: 1, 3, 9>}, {pipeline_mode = #tpu.pipeline_mode<synchronous>, transform_indices = @transform_1, window_bounds = array<i64: 5, 3>}, {pipeline_mode = #tpu.pipeline_mode<synchronous>, transform_indices = @transform_2, window_bounds = array<i64: 5, 1>}, {pipeline_mode = #tpu.pipeline_mode<synchronous>, transform_indices = @transform_3, window_bounds = array<i64: 8, 5>}, {pipeline_mode = #tpu.pipeline_mode<synchronous>, transform_indices = @transform_4, window_bounds = array<i64: 8, 1>}, {transform_indices = @transform_5, window_bounds = array<i64: 1, 8, 9>}]} {
    %c0 = arith.constant 0 : index
    %c0_0 = arith.constant 0 : index
    %c0_1 = arith.constant 0 : index
    %0 = vector.load %arg2[%c0, %c0_0, %c0_1] : memref<1x3x9xf32, #tpu.memory_space<vmem>>, vector<1x3x9xf32>
    %1 = vector.shape_cast %0 : vector<1x3x9xf32> to vector<3x9xf32>
    %c0_2 = arith.constant 0 : index
    %c0_3 = arith.constant 0 : index
    %2 = vector.load %arg3[%c0_2, %c0_3] : memref<5x3xf32, #tpu.memory_space<vmem>>, vector<5x3xf32>
    %c0_4 = arith.constant 0 : index
    %c0_5 = arith.constant 0 : index
    %3 = vector.load %arg5[%c0_4, %c0_5] : memref<8x5xf32, #tpu.memory_space<vmem>>, vector<8x5xf32>
    %c0_6 = arith.constant 0 : index
    %c0_7 = arith.constant 0 : index
    %4 = vector.load %arg4[%c0_6, %c0_7] : memref<5x1xf32, #tpu.memory_space<vmem>>, vector<5x1xf32>
    %c0_8 = arith.constant 0 : index
    %c0_9 = arith.constant 0 : index
    %5 = vector.load %arg6[%c0_8, %c0_9] : memref<8x1xf32, #tpu.memory_space<vmem>>, vector<8x1xf32>
    %6 = vector.shape_cast %4 : vector<5x1xf32> to vector<5x1xf32>
    %7 = vector.broadcast %6 : vector<5x1xf32> to vector<5x9xf32>
    %8 = vector.extract_strided_slice %2 {offsets = [0, 0], sizes = [5, 1], strides = [1, 1]} : vector<5x3xf32> to vector<5x1xf32>
    %9 = vector.extract_strided_slice %1 {offsets = [0, 0], sizes = [1, 9], strides = [1, 1]} : vector<3x9xf32> to vector<1x9xf32>
    %10 = vector.broadcast %8 : vector<5x1xf32> to vector<5x9xf32>
    %11 = vector.broadcast %9 : vector<1x9xf32> to vector<5x9xf32>
    %12 = arith.mulf %10, %11 : vector<5x9xf32>
    %13 = arith.addf %7, %12 : vector<5x9xf32>
    %14 = vector.extract_strided_slice %2 {offsets = [0, 1], sizes = [5, 1], strides = [1, 1]} : vector<5x3xf32> to vector<5x1xf32>
    %15 = vector.extract_strided_slice %1 {offsets = [1, 0], sizes = [1, 9], strides = [1, 1]} : vector<3x9xf32> to vector<1x9xf32>
    %16 = vector.broadcast %14 : vector<5x1xf32> to vector<5x9xf32>
    %17 = vector.broadcast %15 : vector<1x9xf32> to vector<5x9xf32>
    %18 = arith.mulf %16, %17 : vector<5x9xf32>
    %19 = arith.addf %13, %18 : vector<5x9xf32>
    %20 = vector.extract_strided_slice %2 {offsets = [0, 2], sizes = [5, 1], strides = [1, 1]} : vector<5x3xf32> to vector<5x1xf32>
    %21 = vector.extract_strided_slice %1 {offsets = [2, 0], sizes = [1, 9], strides = [1, 1]} : vector<3x9xf32> to vector<1x9xf32>
    %22 = vector.broadcast %20 : vector<5x1xf32> to vector<5x9xf32>
    %23 = vector.broadcast %21 : vector<1x9xf32> to vector<5x9xf32>
    %24 = arith.mulf %22, %23 : vector<5x9xf32>
    %25 = arith.addf %19, %24 : vector<5x9xf32>
    %26 = arith.mulf %25, %25 : vector<5x9xf32>
    %27 = arith.mulf %26, %25 : vector<5x9xf32>
    %cst = arith.constant 4.471500e-02 : f32
    %28 = vector.broadcast %cst : f32 to vector<5x9xf32>
    %29 = arith.mulf %28, %27 : vector<5x9xf32>
    %30 = arith.addf %25, %29 : vector<5x9xf32>
    %cst_10 = arith.constant 0.797884583 : f32
    %31 = vector.broadcast %cst_10 : f32 to vector<5x9xf32>
    %32 = arith.mulf %31, %30 : vector<5x9xf32>
    %33 = math.tanh %32 : vector<5x9xf32>
    %cst_11 = arith.constant 1.000000e+00 : f32
    %34 = vector.broadcast %cst_11 : f32 to vector<5x9xf32>
    %35 = arith.addf %33, %34 : vector<5x9xf32>
    %36 = arith.mulf %25, %35 : vector<5x9xf32>
    %37 = vector.shape_cast %5 : vector<8x1xf32> to vector<8x1xf32>
    %38 = vector.broadcast %37 : vector<8x1xf32> to vector<8x9xf32>
    %39 = vector.extract_strided_slice %3 {offsets = [0, 0], sizes = [8, 1], strides = [1, 1]} : vector<8x5xf32> to vector<8x1xf32>
    %40 = vector.extract_strided_slice %36 {offsets = [0, 0], sizes = [1, 9], strides = [1, 1]} : vector<5x9xf32> to vector<1x9xf32>
    %41 = vector.broadcast %39 : vector<8x1xf32> to vector<8x9xf32>
    %42 = vector.broadcast %40 : vector<1x9xf32> to vector<8x9xf32>
    %43 = arith.mulf %41, %42 : vector<8x9xf32>
    %44 = arith.addf %38, %43 : vector<8x9xf32>
    %45 = vector.extract_strided_slice %3 {offsets = [0, 1], sizes = [8, 1], strides = [1, 1]} : vector<8x5xf32> to vector<8x1xf32>
    %46 = vector.extract_strided_slice %36 {offsets = [1, 0], sizes = [1, 9], strides = [1, 1]} : vector<5x9xf32> to vector<1x9xf32>
    %47 = vector.broadcast %45 : vector<8x1xf32> to vector<8x9xf32>
    %48 = vector.broadcast %46 : vector<1x9xf32> to vector<8x9xf32>
    %49 = arith.mulf %47, %48 : vector<8x9xf32>
    %50 = arith.addf %44, %49 : vector<8x9xf32>
    %51 = vector.extract_strided_slice %3 {offsets = [0, 2], sizes = [8, 1], strides = [1, 1]} : vector<8x5xf32> to vector<8x1xf32>
    %52 = vector.extract_strided_slice %36 {offsets = [2, 0], sizes = [1, 9], strides = [1, 1]} : vector<5x9xf32> to vector<1x9xf32>
    %53 = vector.broadcast %51 : vector<8x1xf32> to vector<8x9xf32>
    %54 = vector.broadcast %52 : vector<1x9xf32> to vector<8x9xf32>
    %55 = arith.mulf %53, %54 : vector<8x9xf32>
    %56 = arith.addf %50, %55 : vector<8x9xf32>
    %57 = vector.extract_strided_slice %3 {offsets = [0, 3], sizes = [8, 1], strides = [1, 1]} : vector<8x5xf32> to vector<8x1xf32>
    %58 = vector.extract_strided_slice %36 {offsets = [3, 0], sizes = [1, 9], strides = [1, 1]} : vector<5x9xf32> to vector<1x9xf32>
    %59 = vector.broadcast %57 : vector<8x1xf32> to vector<8x9xf32>
    %60 = vector.broadcast %58 : vector<1x9xf32> to vector<8x9xf32>
    %61 = arith.mulf %59, %60 : vector<8x9xf32>
    %62 = arith.addf %56, %61 : vector<8x9xf32>
    %63 = vector.extract_strided_slice %3 {offsets = [0, 4], sizes = [8, 1], strides = [1, 1]} : vector<8x5xf32> to vector<8x1xf32>
    %64 = vector.extract_strided_slice %36 {offsets = [4, 0], sizes = [1, 9], strides = [1, 1]} : vector<5x9xf32> to vector<1x9xf32>
    %65 = vector.broadcast %63 : vector<8x1xf32> to vector<8x9xf32>
    %66 = vector.broadcast %64 : vector<1x9xf32> to vector<8x9xf32>
    %67 = arith.mulf %65, %66 : vector<8x9xf32>
    %68 = arith.addf %62, %67 : vector<8x9xf32>
    %c0_12 = arith.constant 0 : index
    %c0_13 = arith.constant 0 : index
    %c0_14 = arith.constant 0 : index
    %69 = vector.load %arg7[%c0_12, %c0_13, %c0_14] : memref<1x8x9xf32, #tpu.memory_space<vmem>>, vector<1x8x9xf32>
    %70 = vector.shape_cast %69 : vector<1x8x9xf32> to vector<8x9xf32>
    %71 = vector.shape_cast %68 : vector<8x9xf32> to vector<1x8x9xf32>
    tpu.vector_store %arg7[%c0_12, %c0_13, %c0_14], %71 {strides = array<i32>} : memref<1x8x9xf32, #tpu.memory_space<vmem>>, vector<1x8x9xf32>,
    return
  }
  func.func @transform_0(%arg0: i32, %arg1: i32) -> (i32, i32, i32) {
    %c0_i32 = arith.constant 0 : i32
    %c0_i32_0 = arith.constant 0 : i32
    return %arg0, %c0_i32, %arg1 : i32, i32, i32
  }
  func.func @transform_1(%arg0: i32, %arg1: i32) -> (i32, i32) {
    %c0_i32 = arith.constant 0 : i32
    %c0_i32_0 = arith.constant 0 : i32
    %c0_i32_1 = arith.constant 0 : i32
    return %c0_i32, %c0_i32_0 : i32, i32
  }
  func.func @transform_2(%arg0: i32, %arg1: i32) -> (i32, i32) {
    %c0_i32 = arith.constant 0 : i32
    %c0_i32_0 = arith.constant 0 : i32
    %c0_i32_1 = arith.constant 0 : i32
    return %c0_i32, %c0_i32_0 : i32, i32
  }
  func.func @transform_3(%arg0: i32, %arg1: i32) -> (i32, i32) {
    %c0_i32 = arith.constant 0 : i32
    %c0_i32_0 = arith.constant 0 : i32
    %c0_i32_1 = arith.constant 0 : i32
    return %c0_i32, %c0_i32_0 : i32, i32
  }
  func.func @transform_4(%arg0: i32, %arg1: i32) -> (i32, i32) {
    %c0_i32 = arith.constant 0 : i32
    %c0_i32_0 = arith.constant 0 : i32
    %c0_i32_1 = arith.constant 0 : i32
    return %c0_i32, %c0_i32_0 : i32, i32
  }
  func.func @transform_5(%arg0: i32, %arg1: i32) -> (i32, i32, i32) {
    %c0_i32 = arith.constant 0 : i32
    %c0_i32_0 = arith.constant 0 : i32
    return %arg0, %c0_i32, %arg1 : i32, i32, i32
  }
}

</mosaic_0001>

<llo_original>
// kernel: tpu_custom_call.1
$region0: #{tpu_custom_call.1}
  #allocation0 [shape = 'u32[]', space=smem, size = 0x4, offset = 0x4, fixed_abs, tag = 'smem constant byte address 0x4 - core index']
  #allocation1 [shape = 'u32[144,128]{1,0:T(1,128)}', space=vmem, size = 0x12000, scoped, tag = 'internal scratch']
  %s0 = inlined_call_operand.vmem [shape: f32[1,3,9], index: 0, kind: input, shape index: {}]
  %s1 = inlined_call_operand.vmem [shape: f32[5,3], index: 1, kind: input, shape index: {}]
  %s2 = inlined_call_operand.vmem [shape: f32[5,1], index: 2, kind: input, shape index: {}]
  %s3 = inlined_call_operand.vmem [shape: f32[8,5], index: 3, kind: input, shape index: {}]
  %s4 = inlined_call_operand.vmem [shape: f32[8,1], index: 4, kind: input, shape index: {}]
  %s5 = inlined_call_operand.hbm [shape: f32[1,8,9], index: 5, kind: output, shape index: {}]
  %s6 = sld [smem:[#allocation0]]
  $region30: #{tpu_custom_call.1} parent=0
    _
  %s8 = ssub.s32 1, %s6
  %s9 = scalar_select 0, %s8, %s6
  $region1: #{tpu_custom_call.1} parent=0
    #allocation2 [shape = 'u8[4096]{0}', space=vmem, size = 0x1000, scoped, tag = 'output window, operand 0, single buffered']
    #allocation3 [shape = 's32[1]{0}', space=sflag, size = 0x4, scoped, tag = 'scoped memory for tpu_custom_call.1']
    %10 = vsyncpa [#allocation3], 0
    // Predicated region
    $region2: #{tpu_custom_call.1} parent=1 // pred_check
      _
    $region3: #{tpu_custom_call.1} parent=1 // pred_check_branch
      %12 = sbr.rel (0) target = $region5
    $region4: #{tpu_custom_call.1} parent=1 // pred_region
      _
    $region5: #{tpu_custom_call.1} parent=1 // pred_fallthru
      _
    // Predicated region
    $region6: #{tpu_custom_call.1} parent=1 // pred_check
      _
    $region7: #{tpu_custom_call.1} parent=1 // pred_check_branch
      %14 = sbr.rel (0) target = $region9
    $region8: #{tpu_custom_call.1} parent=1 // pred_region
      _
    $region9: #{tpu_custom_call.1} parent=1 // pred_fallthru
      _
    // Predicated region
    $region10: #{tpu_custom_call.1} parent=1 // pred_check
      _
    $region11: #{tpu_custom_call.1} parent=1 // pred_check_branch
      %16 = sbr.rel (0) target = $region13
    $region12: #{tpu_custom_call.1} parent=1 // pred_region
      _
    $region13: #{tpu_custom_call.1} parent=1 // pred_fallthru
      _
    // Predicated region
    $region14: #{tpu_custom_call.1} parent=1 // pred_check
      _
    $region15: #{tpu_custom_call.1} parent=1 // pred_check_branch
      %18 = sbr.rel (0) target = $region17
    $region16: #{tpu_custom_call.1} parent=1 // pred_region
      _
    $region17: #{tpu_custom_call.1} parent=1 // pred_fallthru
      _
    // Predicated region
    $region18: #{tpu_custom_call.1} parent=1 // pred_check
      _
    $region19: #{tpu_custom_call.1} parent=1 // pred_check_branch
      %20 = sbr.rel (0) target = $region21
    $region20: #{tpu_custom_call.1} parent=1 // pred_region
      _
    $region21: #{tpu_custom_call.1} parent=1 // pred_fallthru
      _
    %v21 = vld [vmem:[%s0] sm:$0x7]
    %v22 = vld [vmem:[%s1] sm:$0x1f]
    %v23 = vld [vmem:[%s3] sm:$0xff]
    %v24 = vld [vmem:[%s2] sm:$0x1f]
    %v25 = vld [vmem:[%s4] sm:$0xff]
    %27 = vset.pattern.permute.xlu0 0
    %28 = vperm.xlu0 %27, %v24
    %v29 = vpop.permute.xlu0 %28
    %32 = vset.pattern.permute.xlu0 0
    %33 = vperm.xlu0 %32, %v22
    %v34 = vpop.permute.xlu0 %33
    %v36 = vlaneseq
    %v37 = vshrl.u32 %v36, 7
    %v38 = vsub.s32 0, %v37
    %v39 = vrot.slane %v21, %v38
    %v40 = vmul.f32 %v34, %v39
    %v41 = vadd.f32 %v29, %v40
    %42 = vset.pattern.permute.xlu0 1
    %43 = vperm.xlu0 %42, %v22
    %v44 = vpop.permute.xlu0 %43
    %v46 = vlaneseq
    %v47 = vshrl.u32 %v46, 7
    %v48 = vsub.s32 1, %v47
    %v49 = vrot.slane %v21, %v48
    %v50 = vmul.f32 %v44, %v49
    %v51 = vadd.f32 %v41, %v50
    %52 = vset.pattern.permute.xlu0 2
    %53 = vperm.xlu0 %52, %v22
    %v54 = vpop.permute.xlu0 %53
    %v56 = vlaneseq
    %v57 = vshrl.u32 %v56, 7
    %v58 = vsub.s32 2, %v57
    %v59 = vrot.slane %v21, %v58
    %v60 = vmul.f32 %v54, %v59
    %v61 = vadd.f32 %v51, %v60
    %v62 = vmul.f32 %v61, %v61
    %v63 = vmul.f32 %v62, %v61
    %v64 = vmul.f32 %v63, 0.044715
    %v65 = vadd.f32 %v61, %v64
    %v66 = vmul.f32 %v65, 0.7978846
    %v67 = vtanh.pop %v66
    %v68 = vadd.f32 %v67, 1.0
    %v69 = vmul.f32 %v61, %v68
    %71 = vset.pattern.permute.xlu0 0
    %72 = vperm.xlu0 %71, %v25
    %v73 = vpop.permute.xlu0 %72
    %76 = vset.pattern.permute.xlu0 0
    %77 = vperm.xlu0 %76, %v23
    %v78 = vpop.permute.xlu0 %77
    %v80 = vlaneseq
    %v81 = vshrl.u32 %v80, 7
    %v82 = vsub.s32 0, %v81
    %v83 = vrot.slane %v69, %v82
    %v84 = vmul.f32 %v78, %v83
    %v85 = vadd.f32 %v73, %v84
    %86 = vset.pattern.permute.xlu0 1
    %87 = vperm.xlu0 %86, %v23
    %v88 = vpop.permute.xlu0 %87
    %v90 = vlaneseq
    %v91 = vshrl.u32 %v90, 7
    %v92 = vsub.s32 1, %v91
    %v93 = vrot.slane %v69, %v92
    %v94 = vmul.f32 %v88, %v93
    %v95 = vadd.f32 %v85, %v94
    %96 = vset.pattern.permute.xlu0 2
    %97 = vperm.xlu0 %96, %v23
    %v98 = vpop.permute.xlu0 %97
    %v100 = vlaneseq
    %v101 = vshrl.u32 %v100, 7
    %v102 = vsub.s32 2, %v101
    %v103 = vrot.slane %v69, %v102
    %v104 = vmul.f32 %v98, %v103
    %v105 = vadd.f32 %v95, %v104
    %106 = vset.pattern.permute.xlu0 3
    %107 = vperm.xlu0 %106, %v23
    %v108 = vpop.permute.xlu0 %107
    %v110 = vlaneseq
    %v111 = vshrl.u32 %v110, 7
    %v112 = vsub.s32 3, %v111
    %v113 = vrot.slane %v69, %v112
    %v114 = vmul.f32 %v108, %v113
    %v115 = vadd.f32 %v105, %v114
    %116 = vset.pattern.permute.xlu0 4
    %117 = vperm.xlu0 %116, %v23
    %v118 = vpop.permute.xlu0 %117
    %v120 = vlaneseq
    %v121 = vshrl.u32 %v120, 7
    %v122 = vsub.s32 4, %v121
    %v123 = vrot.slane %v69, %v122
    %v124 = vmul.f32 %v118, %v123
    %v125 = vadd.f32 %v115, %v124
    %vm126 = vcmask 72704
    %127 = vst.msk [vmem:[#allocation2] sm:$0xff] %vm126, %v125
    // Predicated region
    $region22: #{tpu_custom_call.1} parent=1 // pred_check
      _
    $region23: #{tpu_custom_call.1} parent=1 // pred_check_branch
      %129 = sbr.rel (0) target = $region25
    $region24: #{tpu_custom_call.1} parent=1 // pred_region
      %s131 = ssub.s32 128, 128
      %132 = vsyncadd [#allocation3], %s131
      %s134 = sshll.u32 [#allocation2], 4
      %s135 = int_to_ptr.vmem [resolvable:$true] %s134
      %137 = dma.vmem_to_hbm [thread:$0]  %s135, 128, %s5, [#allocation3]
    $region25: #{tpu_custom_call.1} parent=1 // pred_fallthru
      _
    // Predicated region
    $region26: #{tpu_custom_call.1} parent=1 // pred_check
      _
    $region27: #{tpu_custom_call.1} parent=1 // pred_check_branch
      %139 = sbr.rel (0) target = $region29
    $region28: #{tpu_custom_call.1} parent=1 // pred_region
      %140 = dma.done [#allocation3], 128
    $region29: #{tpu_custom_call.1} parent=1 // pred_fallthru
      _
    %141 = vsyncpa [#allocation3], 1

</llo_original>
